<compile_context>
chip_gen: v5e
topology: v5e:2x2
jax: 0.10.0
libtpu: 0.0.40
codegen_flags: <defaults>
</compile_context>

<pallas_src>
import jax
import jax.numpy as jnp
from jax.experimental import pallas as pl
from jax.experimental.pallas import tpu as pltpu

_LANE = 128       # TPU lane width (last-dim vreg tile)
_SUBLANE = 8      # TPU sublane width (second-to-last-dim vreg tile)
# Keep per-step VMEM usage below the 32 MiB scoped default (v7x-safe headroom).
_VMEM_BUDGET_BYTES = 24 * 1024 * 1024


def _round_up(x, m):
    return ((x + m - 1) // m) * m


def _head_kernel(x_ref, w1_ref, b1_ref, w2_ref, b2_ref, o_ref):
    # Dropout layers are identity in inference mode.
    # Cast activations to the weight dtype inside the kernel (VALU slot is
    # mostly idle here; avoids a separate XLA pass over `features`).
    x = x_ref[...].astype(w1_ref.dtype)                         # (bm, H)
    # dense: MXU matmul with f32 accumulation, f32 bias add (one lane-aligned
    # (1, H) row broadcast), f32 tanh on the EUP.
    h = jnp.dot(x, w1_ref[...], preferred_element_type=jnp.float32)
    h = h + b1_ref[...]                                         # (1, H) broadcast
    h = jnp.tanh(h)
    # out_proj: cast activations to the weight dtype for the MXU, accumulate
    # in f32, add f32 bias, store lane-dense (L padded to 128 in prepare_*).
    y = jnp.dot(h.astype(w2_ref.dtype), w2_ref[...],
                preferred_element_type=jnp.float32)
    y = y + b2_ref[...]                                         # (1, Lp) broadcast
    o_ref[...] = y.astype(o_ref.dtype)


def prepare_wav2vec2_head_params(w_dense, b_dense, w_out, b_out,
                                 *, compute_dtype=jnp.bfloat16):
    """One-time weight preprocessing (do NOT call per inference).

    w_dense: (H, H); b_dense: (H,); w_out: (H, L); b_out: (L,)  [in, out] layout.
    compute_dtype: MXU input dtype for the weights (bf16 default; f32 exact).
    Returns a params dict consumed by wav2vec2_classification_head_apply.
    """
    H = w_dense.shape[0]
    L = w_out.shape[1]
    # Pad the label dim to a full lane width -> unmasked (lane-dense) output
    # stores and a full MXU column pass for the second matmul.
    L_pad = _round_up(max(L, 1), _LANE)
    w1 = w_dense.astype(compute_dtype)
    w2 = jnp.pad(w_out, ((0, 0), (0, L_pad - L))).astype(compute_dtype)
    # Biases stay f32 and are added post-accumulation as lane-aligned rows.
    b1 = b_dense.astype(jnp.float32).reshape(1, H)
    b2 = jnp.pad(b_out.astype(jnp.float32), (0, L_pad - L)).reshape(1, L_pad)
    return {"w1": w1, "b1": b1, "w2": w2, "b2": b2,
            "hidden": H, "num_labels": L}


def wav2vec2_classification_head_apply(features, params, *, block_batch=512,
                                       out_dtype=None):
    """features: (B, H); params from prepare_wav2vec2_head_params.
    Returns logits (B, L)."""
    B, H = features.shape
    w1, b1, w2, b2 = params["w1"], params["b1"], params["w2"], params["b2"]
    L = params["num_labels"]
    L_pad = w2.shape[1]
    assert params["hidden"] == H, "hidden size mismatch"
    out_dtype = features.dtype if out_dtype is None else out_dtype

    # Batch tile: balance the grid so steps are near-equal (small ragged waste),
    # no wrapper-side batch padding; Pallas masks the ragged last block.
    num_steps = max(1, pl.cdiv(B, max(block_batch, _SUBLANE)))
    bm = _round_up(pl.cdiv(B, num_steps), _SUBLANE)

    # Per-step VMEM footprint: double-buffered x/out tiles plus the (grid-
    # invariant, double-buffered) weight blocks. Shrink bm to stay under the
    # scoped-VMEM budget; if the weights alone blow the budget (very large H),
    # raise the scoped limit explicitly instead (v7x: 32 MiB default / 64 MiB
    # physical).
    def _bytes(a):
        return a.size * a.dtype.itemsize

    weight_bytes = 2 * (_bytes(w1) + _bytes(b1) + _bytes(w2) + _bytes(b2))

    def _step_bytes(tile):
        x_bytes = 2 * tile * H * features.dtype.itemsize
        o_bytes = 2 * tile * L_pad * jnp.dtype(out_dtype).itemsize
        return weight_bytes + x_bytes + o_bytes

    while bm > _SUBLANE and _step_bytes(bm) > _VMEM_BUDGET_BYTES:
        bm = max(_SUBLANE, _round_up(bm // 2, _SUBLANE))

    vmem_limit_bytes = None
    if _step_bytes(bm) > _VMEM_BUDGET_BYTES:
        vmem_limit_bytes = min(_step_bytes(bm) * 5 // 4, 128 * 1024 * 1024)

    grid = (pl.cdiv(B, bm),)

    out = pl.pallas_call(
        _head_kernel,
        out_shape=jax.ShapeDtypeStruct((B, L_pad), out_dtype),
        grid_spec=pltpu.PrefetchScalarGridSpec(
            num_scalar_prefetch=0,
            grid=grid,
            in_specs=[
                pl.BlockSpec((bm, H), lambda i: (i, 0)),        # x tile
                pl.BlockSpec((H, H), lambda i: (0, 0)),         # dense W (resident)
                pl.BlockSpec((1, H), lambda i: (0, 0)),         # dense b
                pl.BlockSpec((H, L_pad), lambda i: (0, 0)),     # out_proj W
                pl.BlockSpec((1, L_pad), lambda i: (0, 0)),     # out_proj b
            ],
            out_specs=pl.BlockSpec((bm, L_pad), lambda i: (i, 0)),
        ),
        compiler_params=pltpu.CompilerParams(
            # Batch axis is embarrassingly parallel; with >= 2 grid steps this
            # lets Mosaic shard across v7x's two TensorCores.
            dimension_semantics=("parallel",),
            vmem_limit_bytes=vmem_limit_bytes),
    )(features, w1, b1, w2, b2)

    return out[:, :L]


def wav2vec2_classification_head(features, w_dense, b_dense, w_out, b_out,
                                 *, compute_dtype=jnp.bfloat16, block_batch=512,
                                 out_dtype=None):
    """One-shot convenience wrapper. For repeated inference, call
    prepare_wav2vec2_head_params once and reuse the params with
    wav2vec2_classification_head_apply (avoids re-casting/padding weights
    every call)."""
    params = prepare_wav2vec2_head_params(w_dense, b_dense, w_out, b_out,
                                          compute_dtype=compute_dtype)
    return wav2vec2_classification_head_apply(features, params,
                                              block_batch=block_batch,
                                              out_dtype=out_dtype)


def _reference(features, w_dense, b_dense, w_out, b_out):
    h = jnp.tanh(features @ w_dense + b_dense)
    return h @ w_out + b_out


if __name__ == "__main__":
    # Small synthetic config: batch=16 pooled feature vectors, hidden=32,
    # num_labels=4.  Deterministic init from PRNGKey(0).
    batch, hidden, num_labels = 16, 32, 4

    key = jax.random.PRNGKey(0)
    k_x, k_w1, k_b1, k_w2, k_b2 = jax.random.split(key, 5)

    features = jax.random.normal(k_x, (batch, hidden), dtype=jnp.float32)
    # Parameters stored as [in, out] (transposed vs. PyTorch's [out, in]).
    w_dense = jax.random.normal(k_w1, (hidden, hidden), dtype=jnp.float32) * 0.05
    b_dense = jax.random.normal(k_b1, (hidden,), dtype=jnp.float32) * 0.01
    w_out = jax.random.normal(k_w2, (hidden, num_labels), dtype=jnp.float32) * 0.05
    b_out = jax.random.normal(k_b2, (num_labels,), dtype=jnp.float32) * 0.01

    ref = _reference(features, w_dense, b_dense, w_out, b_out)

    # Recommended path: prepare weights once (bf16 default), apply many times.
    params_bf16 = prepare_wav2vec2_head_params(w_dense, b_dense, w_out, b_out)
    logits = wav2vec2_classification_head_apply(features, params_bf16)
    jax.block_until_ready(logits)
    assert logits.shape == (batch, num_labels)
    assert jnp.allclose(logits, ref, atol=5e-2, rtol=5e-2)

    # Exact f32 compute path.
    params_f32 = prepare_wav2vec2_head_params(w_dense, b_dense, w_out, b_out,
                                              compute_dtype=jnp.float32)
    logits_f32 = wav2vec2_classification_head_apply(features, params_f32)
    jax.block_until_ready(logits_f32)
    assert logits_f32.shape == (batch, num_labels)
    assert jnp.allclose(logits_f32, ref, atol=1e-5, rtol=1e-5)

    # Ragged batch (B not a multiple of the sublane tile; no wrapper padding).
    logits_odd = wav2vec2_classification_head_apply(features[:10], params_f32)
    jax.block_until_ready(logits_odd)
    assert logits_odd.shape == (10, num_labels)
    assert jnp.allclose(logits_odd, ref[:10], atol=1e-5, rtol=1e-5)

    # Multi-step grid with a ragged last block (force a small batch tile).
    logits_multi = wav2vec2_classification_head_apply(features[:10], params_f32,
                                                      block_batch=8)
    jax.block_until_ready(logits_multi)
    assert logits_multi.shape == (10, num_labels)
    assert jnp.allclose(logits_multi, ref[:10], atol=1e-5, rtol=1e-5)

    # One-shot convenience wrapper (bf16 default).
    logits_once = wav2vec2_classification_head(features, w_dense, b_dense,
                                               w_out, b_out)
    jax.block_until_ready(logits_once)
    assert logits_once.shape == (batch, num_labels)
    assert jnp.allclose(logits_once, ref, atol=5e-2, rtol=5e-2)

    print("KERNEL_OK")
</pallas_src>

<mosaic_0001>
module attributes {stable_mosaic.version = 11 : i64} {
  func.func @_head_kernel(%arg0: i32, %arg1: memref<16x32xf32, #tpu.memory_space<vmem>>, %arg2: memref<32x32xbf16, #tpu.memory_space<vmem>>, %arg3: memref<1x32xf32, #tpu.memory_space<vmem>>, %arg4: memref<32x128xbf16, #tpu.memory_space<vmem>>, %arg5: memref<1x128xf32, #tpu.memory_space<vmem>>, %arg6: memref<16x128xf32, #tpu.memory_space<vmem>>) attributes {dimension_semantics = [#tpu.dimension_semantics<parallel>], iteration_bounds = array<i64: 1>, scalar_prefetch = 0 : i64, scratch_operands = 0 : i64, tpu.core_type = #tpu.core_type<tc>, window_params = [{transform_indices = @transform_0, window_bounds = array<i64: 16, 32>}, {pipeline_mode = #tpu.pipeline_mode<synchronous>, transform_indices = @transform_1, window_bounds = array<i64: 32, 32>}, {pipeline_mode = #tpu.pipeline_mode<synchronous>, transform_indices = @transform_2, window_bounds = array<i64: 1, 32>}, {pipeline_mode = #tpu.pipeline_mode<synchronous>, transform_indices = @transform_3, window_bounds = array<i64: 32, 128>}, {pipeline_mode = #tpu.pipeline_mode<synchronous>, transform_indices = @transform_4, window_bounds = array<i64: 1, 128>}, {transform_indices = @transform_5, window_bounds = array<i64: 16, 128>}]} {
    %c0 = arith.constant 0 : index
    %c0_0 = arith.constant 0 : index
    %0 = vector.load %arg1[%c0, %c0_0] : memref<16x32xf32, #tpu.memory_space<vmem>>, vector<16x32xf32>
    %1 = arith.truncf %0 : vector<16x32xf32> to vector<16x32xbf16>
    %c0_1 = arith.constant 0 : index
    %c0_2 = arith.constant 0 : index
    %2 = vector.load %arg2[%c0_1, %c0_2] : memref<32x32xbf16, #tpu.memory_space<vmem>>, vector<32x32xbf16>
    %cst = arith.constant dense<0.000000e+00> : vector<16x32xf32>
    %3 = tpu.matmul %1, %2, %cst {dimension_numbers = #tpu.dot_dimension_numbers<[1], [0], [0], [1], [0, 0, 1, 1], [], []>} : vector<16x32xbf16>, vector<32x32xbf16>, vector<16x32xf32> -> vector<16x32xf32>
    %c0_3 = arith.constant 0 : index
    %c0_4 = arith.constant 0 : index
    %4 = vector.load %arg3[%c0_3, %c0_4] : memref<1x32xf32, #tpu.memory_space<vmem>>, vector<1x32xf32>
    %5 = vector.broadcast %4 : vector<1x32xf32> to vector<16x32xf32>
    %6 = arith.addf %3, %5 : vector<16x32xf32>
    %7 = math.tanh %6 : vector<16x32xf32>
    %8 = arith.truncf %7 : vector<16x32xf32> to vector<16x32xbf16>
    %c0_5 = arith.constant 0 : index
    %c0_6 = arith.constant 0 : index
    %9 = vector.load %arg4[%c0_5, %c0_6] : memref<32x128xbf16, #tpu.memory_space<vmem>>, vector<32x128xbf16>
    %cst_7 = arith.constant dense<0.000000e+00> : vector<16x128xf32>
    %10 = tpu.matmul %8, %9, %cst_7 {dimension_numbers = #tpu.dot_dimension_numbers<[1], [0], [0], [1], [0, 0, 1, 1], [], []>} : vector<16x32xbf16>, vector<32x128xbf16>, vector<16x128xf32> -> vector<16x128xf32>
    %c0_8 = arith.constant 0 : index
    %c0_9 = arith.constant 0 : index
    %11 = vector.load %arg5[%c0_8, %c0_9] : memref<1x128xf32, #tpu.memory_space<vmem>>, vector<1x128xf32>
    %12 = vector.broadcast %11 : vector<1x128xf32> to vector<16x128xf32>
    %13 = arith.addf %10, %12 : vector<16x128xf32>
    %c0_10 = arith.constant 0 : index
    %c0_11 = arith.constant 0 : index
    %14 = vector.load %arg6[%c0_10, %c0_11] : memref<16x128xf32, #tpu.memory_space<vmem>>, vector<16x128xf32>
    tpu.vector_store %arg6[%c0_10, %c0_11], %13 {strides = array<i32>} : memref<16x128xf32, #tpu.memory_space<vmem>>, vector<16x128xf32>,
    return
  }
  func.func @transform_0(%arg0: i32) -> (i32, i32) {
    %c0_i32 = arith.constant 0 : i32
    %c0_i32_0 = arith.constant 0 : i32
    return %arg0, %c0_i32 : i32, i32
  }
  func.func @transform_1(%arg0: i32) -> (i32, i32) {
    %c0_i32 = arith.constant 0 : i32
    %c0_i32_0 = arith.constant 0 : i32
    %c0_i32_1 = arith.constant 0 : i32
    return %c0_i32, %c0_i32_0 : i32, i32
  }
  func.func @transform_2(%arg0: i32) -> (i32, i32) {
    %c0_i32 = arith.constant 0 : i32
    %c0_i32_0 = arith.constant 0 : i32
    %c0_i32_1 = arith.constant 0 : i32
    return %c0_i32, %c0_i32_0 : i32, i32
  }
  func.func @transform_3(%arg0: i32) -> (i32, i32) {
    %c0_i32 = arith.constant 0 : i32
    %c0_i32_0 = arith.constant 0 : i32
    %c0_i32_1 = arith.constant 0 : i32
    return %c0_i32, %c0_i32_0 : i32, i32
  }
  func.func @transform_4(%arg0: i32) -> (i32, i32) {
    %c0_i32 = arith.constant 0 : i32
    %c0_i32_0 = arith.constant 0 : i32
    %c0_i32_1 = arith.constant 0 : i32
    return %c0_i32, %c0_i32_0 : i32, i32
  }
  func.func @transform_5(%arg0: i32) -> (i32, i32) {
    %c0_i32 = arith.constant 0 : i32
    %c0_i32_0 = arith.constant 0 : i32
    return %arg0, %c0_i32 : i32, i32
  }
}

</mosaic_0001>

<llo_original>
// kernel: tpu_custom_call.1
$region0: #{tpu_custom_call.1}
  #allocation0 [shape = 'u32[]', space=smem, size = 0x4, offset = 0x4, fixed_abs, tag = 'smem constant byte address 0x4 - core index']
  #allocation1 [shape = 'u32[72,128]{1,0:T(1,128)}', space=vmem, size = 0x9000, scoped, tag = 'internal scratch']
  %s0 = inlined_call_operand.hbm [shape: f32[16,32], index: 0, kind: input, shape index: {}]
  %s1 = inlined_call_operand.hbm [shape: bf16[32,32], index: 1, kind: input, shape index: {}]
  %s2 = inlined_call_operand.vmem [shape: f32[1,32], index: 2, kind: input, shape index: {}]
  %s3 = inlined_call_operand.hbm [shape: bf16[32,128], index: 3, kind: input, shape index: {}]
  %s4 = inlined_call_operand.vmem [shape: f32[1,128], index: 4, kind: input, shape index: {}]
  %s5 = inlined_call_operand.hbm [shape: f32[16,128], index: 5, kind: output, shape index: {}]
  %s6 = sld [smem:[#allocation0]]
  $region42: #{tpu_custom_call.1} parent=0
    _
  %s8 = ssub.s32 1, %s6
  %s9 = scalar_select 0, %s8, %s6
  $region1: #{tpu_custom_call.1} parent=0
    #allocation2 [shape = 'u8[8192]{0}', space=vmem, size = 0x2000, scoped, tag = 'input window, operand 0, single buffered']
    #allocation3 [shape = 's32[1]{0}', space=sflag, size = 0x4, scoped, tag = 'scoped memory for tpu_custom_call.1']
    #allocation4 [shape = 's32[1]{0}', space=sflag, size = 0x4, scoped, tag = 'scoped memory for tpu_custom_call.1']
    #allocation5 [shape = 'u8[8192]{0}', space=vmem, size = 0x2000, scoped, tag = 'input window, operand 1, single buffered']
    #allocation6 [shape = 's32[1]{0}', space=sflag, size = 0x4, scoped, tag = 'scoped memory for tpu_custom_call.1']
    #allocation7 [shape = 'u8[8192]{0}', space=vmem, size = 0x2000, scoped, tag = 'input window, operand 3, single buffered']
    #allocation8 [shape = 'u8[8192]{0}', space=vmem, size = 0x2000, scoped, tag = 'output window, operand 0, single buffered']
    %10 = vsyncpa [#allocation3], 0
    %11 = vsyncpa [#allocation6], 0
    %12 = vsyncpa [#allocation4], 0
    // Predicated region
    $region2: #{tpu_custom_call.1} parent=1 // pred_check
      _
    $region3: #{tpu_custom_call.1} parent=1 // pred_check_branch
      %14 = sbr.rel (0) target = $region5
    $region4: #{tpu_custom_call.1} parent=1 // pred_region
      %16 = vsyncadd [#allocation3], 0
      %s17 = sshll.u32 %s0, 4
      %s18 = int_to_ptr.hbm [resolvable:$true] %s17
      %s19 = sshll.u32 [#allocation2], 4
      %s20 = int_to_ptr.vmem [resolvable:$true] %s19
      %25 = dma.hbm_to_vmem [thread:$0]  %s18, 256, %s20, [#allocation3], 128, 128, 8
    $region5: #{tpu_custom_call.1} parent=1 // pred_fallthru
      _
    // Predicated region
    $region6: #{tpu_custom_call.1} parent=1 // pred_check
      _
    $region7: #{tpu_custom_call.1} parent=1 // pred_check_branch
      %27 = sbr.rel (0) target = $region9
    $region8: #{tpu_custom_call.1} parent=1 // pred_region
      %29 = vsyncadd [#allocation6], 0
      %s30 = sshll.u32 %s1, 4
      %s31 = int_to_ptr.hbm [resolvable:$true] %s30
      %s32 = sshll.u32 [#allocation5], 4
      %s33 = int_to_ptr.vmem [resolvable:$true] %s32
      %38 = dma.hbm_to_vmem [thread:$0]  %s31, 256, %s33, [#allocation6], 64, 64, 4
    $region9: #{tpu_custom_call.1} parent=1 // pred_fallthru
      _
    // Predicated region
    $region10: #{tpu_custom_call.1} parent=1 // pred_check
      _
    $region11: #{tpu_custom_call.1} parent=1 // pred_check_branch
      %40 = sbr.rel (0) target = $region13
    $region12: #{tpu_custom_call.1} parent=1 // pred_region
      _
    $region13: #{tpu_custom_call.1} parent=1 // pred_fallthru
      _
    // Predicated region
    $region14: #{tpu_custom_call.1} parent=1 // pred_check
      _
    $region15: #{tpu_custom_call.1} parent=1 // pred_check_branch
      %42 = sbr.rel (0) target = $region17
    $region16: #{tpu_custom_call.1} parent=1 // pred_region
      %44 = vsyncadd [#allocation6], 0
      %s45 = sshll.u32 %s3, 4
      %s46 = int_to_ptr.hbm [resolvable:$true] %s45
      %s47 = sshll.u32 [#allocation7], 4
      %s48 = int_to_ptr.vmem [resolvable:$true] %s47
      %53 = dma.hbm_to_vmem [thread:$0]  %s46, 256, %s48, [#allocation6], 64, 64, 4
    $region17: #{tpu_custom_call.1} parent=1 // pred_fallthru
      _
    // Predicated region
    $region18: #{tpu_custom_call.1} parent=1 // pred_check
      _
    $region19: #{tpu_custom_call.1} parent=1 // pred_check_branch
      %55 = sbr.rel (0) target = $region21
    $region20: #{tpu_custom_call.1} parent=1 // pred_region
      _
    $region21: #{tpu_custom_call.1} parent=1 // pred_fallthru
      _
    // Predicated region
    $region22: #{tpu_custom_call.1} parent=1 // pred_check
      _
    $region23: #{tpu_custom_call.1} parent=1 // pred_check_branch
      %57 = sbr.rel (0) target = $region25
    $region24: #{tpu_custom_call.1} parent=1 // pred_region
      %59 = dma.done [#allocation3], 256
    $region25: #{tpu_custom_call.1} parent=1 // pred_fallthru
      _
    // Predicated region
    $region26: #{tpu_custom_call.1} parent=1 // pred_check
      _
    $region27: #{tpu_custom_call.1} parent=1 // pred_check_branch
      %61 = sbr.rel (0) target = $region29
    $region28: #{tpu_custom_call.1} parent=1 // pred_region
      %63 = dma.done [#allocation6], 256
    $region29: #{tpu_custom_call.1} parent=1 // pred_fallthru
      _
    // Predicated region
    $region30: #{tpu_custom_call.1} parent=1 // pred_check
      _
    $region31: #{tpu_custom_call.1} parent=1 // pred_check_branch
      %65 = sbr.rel (0) target = $region33
    $region32: #{tpu_custom_call.1} parent=1 // pred_region
      %67 = dma.done [#allocation6], 256
    $region33: #{tpu_custom_call.1} parent=1 // pred_fallthru
      _
    %v69 = vld [vmem:[#allocation2] sm:$0xff]
    %v70 = vld [vmem:[#allocation2 + $0x8] sm:$0xff]
    %v71 = vpack.c.bf16 %v70, %v69
    %v72 = vld [vmem:[#allocation5] sm:$0xf]
    %v73 = vld [vmem:[#allocation5 + $0x4] sm:$0xf]
    %v74 = vld [vmem:[#allocation5 + $0x8] sm:$0xf]
    %v75 = vld [vmem:[#allocation5 + $0xc] sm:$0xf]
    %v76 = vld [vmem:[%s2] sm:$0x1]
    %v78 = vperm.slane %v76, 0
    %v84 = vunpack.c.l.b16 %v72
    %v85 = vunpack.c.l.b16 %v73
    %v86 = vunpack.c.l.b16 %v74
    %v87 = vunpack.c.l.b16 %v75
    %v88 = vpack.c.b16 %v85, %v84
    %v89 = vpack.c.b16 %v87, %v86
    %vm92 = vcmask 261120
    %v94 = vsel %vm92, %v71, 0
    %96 = vmatpush.bf16.msra.mxu0 0
    %97 = vmatpush.bf16.msra.mxu0 0
    %98 = vmatpush.bf16.msra.mxu0 0
    %99 = vmatpush.bf16.msra.mxu0 0
    %100 = vmatpush.bf16.msra.mxu0 0
    %101 = vmatpush.bf16.msra.mxu0 0
    %102 = vmatpush.bf16.msra.mxu0 %v89
    %103 = vmatpush.bf16.msra.mxu0 %v88
    %104 = vmatmul.bf16.gmra.mxu0 %v94
    %v105 = vpop.f32.mrf.mxu0
    %v106 = vadd.f32 %v78, %v105
    %v107 = vpop.f32.mrf.mxu0
    %v108 = vadd.f32 %v78, %v107
    %109 = vdwg.mxu0
    %v110 = vtanh.pop %v106
    %v111 = vtanh.pop %v108
    %v112 = vpack.c.bf16 %v111, %v110
    %v113 = vld [vmem:[#allocation7] sm:$0xf]
    %v114 = vld [vmem:[#allocation7 + $0x4] sm:$0xf]
    %v115 = vld [vmem:[#allocation7 + $0x8] sm:$0xf]
    %v116 = vld [vmem:[#allocation7 + $0xc] sm:$0xf]
    %v117 = vld [vmem:[%s4] sm:$0x1]
    %v119 = vperm.slane %v117, 0
    %v125 = vunpack.c.l.b16 %v113
    %v126 = vunpack.c.l.b16 %v114
    %v127 = vunpack.c.l.b16 %v115
    %v128 = vunpack.c.l.b16 %v116
    %v129 = vpack.c.b16 %v126, %v125
    %v130 = vpack.c.b16 %v128, %v127
    %v134 = vsel %vm92, %v112, 0
    %136 = vmatpush.bf16.msra.mxu0 0
    %137 = vmatpush.bf16.msra.mxu0 0
    %138 = vmatpush.bf16.msra.mxu0 0
    %139 = vmatpush.bf16.msra.mxu0 0
    %140 = vmatpush.bf16.msra.mxu0 0
    %141 = vmatpush.bf16.msra.mxu0 0
    %142 = vmatpush.bf16.msra.mxu0 %v130
    %143 = vmatpush.bf16.msra.mxu0 %v129
    %144 = vmatmul.bf16.gmra.mxu0 %v134
    %v145 = vpop.f32.mrf.mxu0
    %v146 = vadd.f32 %v119, %v145
    %v147 = vpop.f32.mrf.mxu0
    %v148 = vadd.f32 %v119, %v147
    %149 = vdwg.mxu0
    %150 = vst [vmem:[#allocation8] sm:$0xff] %v146
    %151 = vst [vmem:[#allocation8 + $0x8] sm:$0xff] %v148
    // Predicated region
    $region34: #{tpu_custom_call.1} parent=1 // pred_check
      _
    $region35: #{tpu_custom_call.1} parent=1 // pred_check_branch
      %153 = sbr.rel (0) target = $region37
    $region36: #{tpu_custom_call.1} parent=1 // pred_region
      %155 = vsyncadd [#allocation4], 0
      %s156 = sshll.u32 [#allocation8], 4
      %s157 = int_to_ptr.vmem [resolvable:$true] %s156
      %s158 = sshll.u32 %s5, 4
      %s159 = int_to_ptr.hbm [resolvable:$true] %s158
      %164 = dma.vmem_to_hbm [thread:$0]  %s157, 256, %s159, [#allocation4], 128, 128, 8
    $region37: #{tpu_custom_call.1} parent=1 // pred_fallthru
      _
    // Predicated region
    $region38: #{tpu_custom_call.1} parent=1 // pred_check
      _
    $region39: #{tpu_custom_call.1} parent=1 // pred_check_branch
      %166 = sbr.rel (0) target = $region41
    $region40: #{tpu_custom_call.1} parent=1 // pred_region
      %168 = dma.done [#allocation4], 256
    $region41: #{tpu_custom_call.1} parent=1 // pred_fallthru
      _
    %169 = vsyncpa [#allocation3], 1
    %170 = vsyncpa [#allocation6], 1
    %171 = vsyncpa [#allocation4], 1

</llo_original>
